<compile_context>
chip_gen: v5e
topology: v5e:2x2
jax: 0.10.0
libtpu: 0.0.40
codegen_flags: <defaults>
</compile_context>

<pallas_src>
import functools

import jax
import jax.numpy as jnp
from jax.experimental import pallas as pl
from jax.experimental.pallas import tpu as pltpu


def _round_up(x, m):
    return ((x + m - 1) // m) * m


def _vmem_limit_bytes():
    """Generation-aware scoped-VMEM limit (~48 MiB on v7x, 96 MiB on v5e/v6e)."""
    cap = 128 * 1024 * 1024
    try:
        cap = int(getattr(pltpu.get_tpu_info(), "vmem_capacity_bytes", cap))
    except Exception:
        pass  # unknown chip / interpret mode: keep conservative default
    return min((cap * 3) // 4, 96 * 1024 * 1024)


def _choose_batch_tile(n, max_tile=1024):
    """Batch tile: large enough to amortize per-step overhead, and >=2 grid
    steps whenever possible so v7x's second TensorCore gets work."""
    n_min = _round_up(n, 8)
    if n_min <= 32:
        return n_min  # single full-extent block (tiny batch)
    num_steps = max(2, pl.cdiv(n_min, max_tile))
    # 16-row alignment keeps both f32 (8,128) and bf16 (16,128) tilings happy
    # for multi-block row offsets.
    return _round_up(pl.cdiv(n_min, num_steps), 16)


def _triple_stream_kernel(x1_ref, x2_ref, x3_ref,
                          w1_ref, w2_ref, w3_ref, b_in_ref,
                          wh_ref, bh_ref, wc_ref, bc_ref,
                          out_ref):
    f32 = jnp.float32
    cdt = w1_ref.dtype            # MXU operand dtype (bf16); accumulation f32
    b_in = b_in_ref[...]          # (3, hidden) f32

    # Stage 1: per-stream feature transforms, relu(x_i @ W_i + b_i).
    s1 = jnp.dot(x1_ref[...].astype(cdt), w1_ref[...], preferred_element_type=f32)
    s1 = jnp.maximum(s1 + b_in[0:1, :], 0.0).astype(cdt)
    s2 = jnp.dot(x2_ref[...].astype(cdt), w2_ref[...], preferred_element_type=f32)
    s2 = jnp.maximum(s2 + b_in[1:2, :], 0.0).astype(cdt)
    s3 = jnp.dot(x3_ref[...].astype(cdt), w3_ref[...], preferred_element_type=f32)
    s3 = jnp.maximum(s3 + b_in[2:3, :], 0.0).astype(cdt)

    # Stage 2: hidden layer over the (implicit) concat of the three streams:
    #   concat(s1,s2,s3) @ [Wh1; Wh2; Wh3] == s1@Wh1 + s2@Wh2 + s3@Wh3.
    h = jnp.dot(s1, wh_ref[0], preferred_element_type=f32)
    h = h + jnp.dot(s2, wh_ref[1], preferred_element_type=f32)
    h = h + jnp.dot(s3, wh_ref[2], preferred_element_type=f32)
    h = jnp.maximum(h + bh_ref[...], 0.0).astype(cdt)

    # Stage 3: classification logits, lane-dense (Cp-wide) writeback.
    logits = jnp.dot(h, wc_ref[...], preferred_element_type=f32) + bc_ref[...]
    out_ref[...] = logits.astype(out_ref.dtype)


def pack_params(params, compute_dtype=jnp.bfloat16):
    """Pack/cast the module parameters ONCE (stack stream weights, pad the
    classification dim to a lane-dense multiple of 128, cast matmul operands
    to bf16).  Reuse the returned dict across forward calls."""
    (w1, b1, w2, b2, w3, b3, wh1, wh2, wh3, bh, wc, bc) = params
    hidden = w1.shape[1]
    num_classes = wc.shape[1]
    cp = _round_up(num_classes, 128)

    b_in = jnp.stack([b1.reshape(-1), b2.reshape(-1), b3.reshape(-1)], axis=0)
    w_h = jnp.stack([wh1, wh2, wh3], axis=0).astype(compute_dtype)
    w_c = jnp.zeros((hidden, cp), compute_dtype).at[:, :num_classes].set(
        wc.astype(compute_dtype))
    b_c = jnp.zeros((1, cp), jnp.float32).at[:, :num_classes].set(bc.reshape(1, -1))

    return dict(
        w1=w1.astype(compute_dtype), w2=w2.astype(compute_dtype),
        w3=w3.astype(compute_dtype),
        b_in=b_in.astype(jnp.float32),
        w_h=w_h, b_h=bh.reshape(1, hidden).astype(jnp.float32),
        w_c=w_c, b_c=b_c)


def action_net_triple_stream_forward(x1, x2, x3, packed, *, num_classes,
                                     out_dtype=jnp.bfloat16, max_tile=1024):
    """Triple-stream MLP forward as a single batch-tiled Pallas kernel."""
    w1, w2, w3 = packed["w1"], packed["w2"], packed["w3"]
    b_in, w_h, b_h = packed["b_in"], packed["w_h"], packed["b_h"]
    w_c, b_c = packed["w_c"], packed["b_c"]

    n = x1.shape[0]
    d1, d2, d3 = x1.shape[1], x2.shape[1], x3.shape[1]
    hidden = w1.shape[1]
    cp = w_c.shape[1]

    tm = _choose_batch_tile(n, max_tile)
    n_pad = _round_up(n, tm)
    grid = (n_pad // tm,)

    def prep(x):
        # Only wrapper-side activation work: pad batch rows when the tile does
        # not divide the batch (keeps the kernel's row blocks aligned).
        if n_pad != n:
            x = jnp.pad(x, ((0, n_pad - n), (0, 0)))
        return x

    x1p, x2p, x3p = prep(x1), prep(x2), prep(x3)

    flops = 2 * n_pad * ((d1 + d2 + d3) * hidden + 3 * hidden * hidden + hidden * cp)
    bytes_accessed = sum(int(a.size) * a.dtype.itemsize for a in
                         (x1p, x2p, x3p, w1, w2, w3, b_in, w_h, b_h, w_c, b_c))
    bytes_accessed += n_pad * cp * jnp.dtype(out_dtype).itemsize

    out = pl.pallas_call(
        _triple_stream_kernel,
        out_shape=jax.ShapeDtypeStruct((n_pad, cp), out_dtype),
        grid_spec=pltpu.PrefetchScalarGridSpec(
            num_scalar_prefetch=0,
            grid=grid,
            in_specs=[
                pl.BlockSpec((tm, d1), lambda i: (i, 0)),            # x1 tile
                pl.BlockSpec((tm, d2), lambda i: (i, 0)),            # x2 tile
                pl.BlockSpec((tm, d3), lambda i: (i, 0)),            # x3 tile
                pl.BlockSpec((d1, hidden), lambda i: (0, 0)),        # W1 (resident)
                pl.BlockSpec((d2, hidden), lambda i: (0, 0)),        # W2 (resident)
                pl.BlockSpec((d3, hidden), lambda i: (0, 0)),        # W3 (resident)
                pl.BlockSpec((3, hidden), lambda i: (0, 0)),         # b1/b2/b3
                pl.BlockSpec((3, hidden, hidden), lambda i: (0, 0, 0)),  # Wh stack
                pl.BlockSpec((1, hidden), lambda i: (0, 0)),         # bh
                pl.BlockSpec((hidden, cp), lambda i: (0, 0)),        # Wc (padded)
                pl.BlockSpec((1, cp), lambda i: (0, 0)),             # bc (padded)
            ],
            out_specs=pl.BlockSpec((tm, cp), lambda i: (i, 0)),
        ),
        compiler_params=pltpu.CompilerParams(
            dimension_semantics=("parallel",),
            vmem_limit_bytes=_vmem_limit_bytes(),
        ),
        cost_estimate=pl.CostEstimate(
            flops=int(flops), transcendentals=0,
            bytes_accessed=int(bytes_accessed)),
    )(x1p, x2p, x3p, w1, w2, w3, b_in, w_h, b_h, w_c, b_c)

    # Strip batch padding and class-lane padding.
    return out[:n, :num_classes]


def init_params(key, d1, d2, d3, hidden, num_classes):
    """Deterministic synthetic parameters (not a checkpoint load)."""
    ks = jax.random.split(key, 12)

    def lin(k, fan_in, fan_out):
        scale = 1.0 / jnp.sqrt(jnp.float32(fan_in))
        return jax.random.uniform(k, (fan_in, fan_out), jnp.float32, -1.0, 1.0) * scale

    w1 = lin(ks[0], d1, hidden)
    b1 = jax.random.uniform(ks[1], (1, hidden), jnp.float32, -0.1, 0.1)
    w2 = lin(ks[2], d2, hidden)
    b2 = jax.random.uniform(ks[3], (1, hidden), jnp.float32, -0.1, 0.1)
    w3 = lin(ks[4], d3, hidden)
    b3 = jax.random.uniform(ks[5], (1, hidden), jnp.float32, -0.1, 0.1)
    # Hidden weight over the concatenated (3*hidden) features, split in 3 blocks.
    wh1 = lin(ks[6], hidden, hidden)
    wh2 = lin(ks[7], hidden, hidden)
    wh3 = lin(ks[8], hidden, hidden)
    bh = jax.random.uniform(ks[9], (1, hidden), jnp.float32, -0.1, 0.1)
    wc = lin(ks[10], hidden, num_classes)
    bc = jax.random.uniform(ks[11], (1, num_classes), jnp.float32, -0.1, 0.1)
    return (w1, b1, w2, b2, w3, b3, wh1, wh2, wh3, bh, wc, bc)


def reference_forward(x1, x2, x3, params):
    """Pure-JAX f32 reference (module semantics) for correctness checking."""
    (w1, b1, w2, b2, w3, b3, wh1, wh2, wh3, bh, wc, bc) = params
    s1 = jax.nn.relu(x1 @ w1 + b1)
    s2 = jax.nn.relu(x2 @ w2 + b2)
    s3 = jax.nn.relu(x3 @ w3 + b3)
    cat = jnp.concatenate([s1, s2, s3], axis=-1)
    wh = jnp.concatenate([wh1, wh2, wh3], axis=0)
    h = jax.nn.relu(cat @ wh + bh)
    return h @ wc + bc


def _run_case(key, batch, d1, d2, d3, hidden, num_classes):
    k_x1, k_x2, k_x3, k_p = jax.random.split(key, 4)
    x1 = jax.random.normal(k_x1, (batch, d1), jnp.float32)
    x2 = jax.random.normal(k_x2, (batch, d2), jnp.float32)
    x3 = jax.random.normal(k_x3, (batch, d3), jnp.float32)
    params = init_params(k_p, d1, d2, d3, hidden, num_classes)

    # Pack (stack / pad / cast) the weights ONCE and reuse across calls.
    packed = pack_params(params)
    fwd = jax.jit(functools.partial(action_net_triple_stream_forward,
                                    num_classes=num_classes))

    out = jax.block_until_ready(fwd(x1, x2, x3, packed))

    ref = reference_forward(x1, x2, x3, params)
    assert out.shape == (batch, num_classes)
    # bf16 matmul operands + bf16 logits (f32 accumulation) vs f32 reference.
    assert jnp.allclose(out.astype(jnp.float32), ref, atol=5e-2, rtol=5e-2), \
        "mismatch vs reference"


if __name__ == "__main__":
    key = jax.random.PRNGKey(0)
    k_a, k_b = jax.random.split(key, 2)

    # Small shapes consistent with the module: batch=8, per-stream dims 32/32/32,
    # hidden=32, classes=16.
    _run_case(k_a, batch=8, d1=32, d2=32, d3=32, hidden=32, num_classes=16)
    # Unaligned shapes to exercise padding, the 2-step batch grid and the
    # non-128 contraction dims.
    _run_case(k_b, batch=300, d1=40, d2=50, d3=30, hidden=48, num_classes=11)

    print("KERNEL_OK")
</pallas_src>

<mosaic_0001>
module attributes {stable_mosaic.version = 11 : i64} {
  func.func @_triple_stream_kernel(%arg0: i32, %arg1: memref<8x32xf32, #tpu.memory_space<vmem>>, %arg2: memref<8x32xf32, #tpu.memory_space<vmem>>, %arg3: memref<8x32xf32, #tpu.memory_space<vmem>>, %arg4: memref<32x32xbf16, #tpu.memory_space<vmem>>, %arg5: memref<32x32xbf16, #tpu.memory_space<vmem>>, %arg6: memref<32x32xbf16, #tpu.memory_space<vmem>>, %arg7: memref<3x32xf32, #tpu.memory_space<vmem>>, %arg8: memref<3x32x32xbf16, #tpu.memory_space<vmem>>, %arg9: memref<1x32xf32, #tpu.memory_space<vmem>>, %arg10: memref<32x128xbf16, #tpu.memory_space<vmem>>, %arg11: memref<1x128xf32, #tpu.memory_space<vmem>>, %arg12: memref<8x128xbf16, #tpu.memory_space<vmem>>) attributes {dimension_semantics = [#tpu.dimension_semantics<parallel>], iteration_bounds = array<i64: 1>, scalar_prefetch = 0 : i64, scratch_operands = 0 : i64, tpu.core_type = #tpu.core_type<tc>, window_params = [{transform_indices = @transform_0, window_bounds = array<i64: 8, 32>}, {transform_indices = @transform_1, window_bounds = array<i64: 8, 32>}, {transform_indices = @transform_2, window_bounds = array<i64: 8, 32>}, {pipeline_mode = #tpu.pipeline_mode<synchronous>, transform_indices = @transform_3, window_bounds = array<i64: 32, 32>}, {pipeline_mode = #tpu.pipeline_mode<synchronous>, transform_indices = @transform_4, window_bounds = array<i64: 32, 32>}, {pipeline_mode = #tpu.pipeline_mode<synchronous>, transform_indices = @transform_5, window_bounds = array<i64: 32, 32>}, {pipeline_mode = #tpu.pipeline_mode<synchronous>, transform_indices = @transform_6, window_bounds = array<i64: 3, 32>}, {pipeline_mode = #tpu.pipeline_mode<synchronous>, transform_indices = @transform_7, window_bounds = array<i64: 3, 32, 32>}, {pipeline_mode = #tpu.pipeline_mode<synchronous>, transform_indices = @transform_8, window_bounds = array<i64: 1, 32>}, {pipeline_mode = #tpu.pipeline_mode<synchronous>, transform_indices = @transform_9, window_bounds = array<i64: 32, 128>}, {pipeline_mode = #tpu.pipeline_mode<synchronous>, transform_indices = @transform_10, window_bounds = array<i64: 1, 128>}, {transform_indices = @transform_11, window_bounds = array<i64: 8, 128>}]} {
    %c0 = arith.constant 0 : index
    %c0_0 = arith.constant 0 : index
    %0 = vector.load %arg7[%c0, %c0_0] : memref<3x32xf32, #tpu.memory_space<vmem>>, vector<3x32xf32>
    %c0_1 = arith.constant 0 : index
    %c0_2 = arith.constant 0 : index
    %1 = vector.load %arg1[%c0_1, %c0_2] : memref<8x32xf32, #tpu.memory_space<vmem>>, vector<8x32xf32>
    %2 = arith.truncf %1 : vector<8x32xf32> to vector<8x32xbf16>
    %c0_3 = arith.constant 0 : index
    %c0_4 = arith.constant 0 : index
    %3 = vector.load %arg4[%c0_3, %c0_4] : memref<32x32xbf16, #tpu.memory_space<vmem>>, vector<32x32xbf16>
    %cst = arith.constant dense<0.000000e+00> : vector<8x32xf32>
    %4 = tpu.matmul %2, %3, %cst {dimension_numbers = #tpu.dot_dimension_numbers<[1], [0], [0], [1], [0, 0, 1, 1], [], []>} : vector<8x32xbf16>, vector<32x32xbf16>, vector<8x32xf32> -> vector<8x32xf32>
    %5 = vector.extract_strided_slice %0 {offsets = [0, 0], sizes = [1, 32], strides = [1, 1]} : vector<3x32xf32> to vector<1x32xf32>
    %6 = vector.broadcast %5 : vector<1x32xf32> to vector<8x32xf32>
    %7 = arith.addf %4, %6 : vector<8x32xf32>
    %cst_5 = arith.constant 0.000000e+00 : f32
    %8 = vector.broadcast %cst_5 : f32 to vector<8x32xf32>
    %9 = arith.maximumf %7, %8 : vector<8x32xf32>
    %10 = arith.truncf %9 : vector<8x32xf32> to vector<8x32xbf16>
    %c0_6 = arith.constant 0 : index
    %c0_7 = arith.constant 0 : index
    %11 = vector.load %arg2[%c0_6, %c0_7] : memref<8x32xf32, #tpu.memory_space<vmem>>, vector<8x32xf32>
    %12 = arith.truncf %11 : vector<8x32xf32> to vector<8x32xbf16>
    %c0_8 = arith.constant 0 : index
    %c0_9 = arith.constant 0 : index
    %13 = vector.load %arg5[%c0_8, %c0_9] : memref<32x32xbf16, #tpu.memory_space<vmem>>, vector<32x32xbf16>
    %cst_10 = arith.constant dense<0.000000e+00> : vector<8x32xf32>
    %14 = tpu.matmul %12, %13, %cst_10 {dimension_numbers = #tpu.dot_dimension_numbers<[1], [0], [0], [1], [0, 0, 1, 1], [], []>} : vector<8x32xbf16>, vector<32x32xbf16>, vector<8x32xf32> -> vector<8x32xf32>
    %15 = vector.extract_strided_slice %0 {offsets = [1, 0], sizes = [1, 32], strides = [1, 1]} : vector<3x32xf32> to vector<1x32xf32>
    %16 = vector.broadcast %15 : vector<1x32xf32> to vector<8x32xf32>
    %17 = arith.addf %14, %16 : vector<8x32xf32>
    %cst_11 = arith.constant 0.000000e+00 : f32
    %18 = vector.broadcast %cst_11 : f32 to vector<8x32xf32>
    %19 = arith.maximumf %17, %18 : vector<8x32xf32>
    %20 = arith.truncf %19 : vector<8x32xf32> to vector<8x32xbf16>
    %c0_12 = arith.constant 0 : index
    %c0_13 = arith.constant 0 : index
    %21 = vector.load %arg3[%c0_12, %c0_13] : memref<8x32xf32, #tpu.memory_space<vmem>>, vector<8x32xf32>
    %22 = arith.truncf %21 : vector<8x32xf32> to vector<8x32xbf16>
    %c0_14 = arith.constant 0 : index
    %c0_15 = arith.constant 0 : index
    %23 = vector.load %arg6[%c0_14, %c0_15] : memref<32x32xbf16, #tpu.memory_space<vmem>>, vector<32x32xbf16>
    %cst_16 = arith.constant dense<0.000000e+00> : vector<8x32xf32>
    %24 = tpu.matmul %22, %23, %cst_16 {dimension_numbers = #tpu.dot_dimension_numbers<[1], [0], [0], [1], [0, 0, 1, 1], [], []>} : vector<8x32xbf16>, vector<32x32xbf16>, vector<8x32xf32> -> vector<8x32xf32>
    %25 = vector.extract_strided_slice %0 {offsets = [2, 0], sizes = [1, 32], strides = [1, 1]} : vector<3x32xf32> to vector<1x32xf32>
    %26 = vector.broadcast %25 : vector<1x32xf32> to vector<8x32xf32>
    %27 = arith.addf %24, %26 : vector<8x32xf32>
    %cst_17 = arith.constant 0.000000e+00 : f32
    %28 = vector.broadcast %cst_17 : f32 to vector<8x32xf32>
    %29 = arith.maximumf %27, %28 : vector<8x32xf32>
    %30 = arith.truncf %29 : vector<8x32xf32> to vector<8x32xbf16>
    %c0_18 = arith.constant 0 : index
    %c0_19 = arith.constant 0 : index
    %c0_20 = arith.constant 0 : index
    %31 = vector.load %arg8[%c0_18, %c0_19, %c0_20] : memref<3x32x32xbf16, #tpu.memory_space<vmem>>, vector<1x32x32xbf16>
    %32 = vector.shape_cast %31 : vector<1x32x32xbf16> to vector<32x32xbf16>
    %cst_21 = arith.constant dense<0.000000e+00> : vector<8x32xf32>
    %33 = tpu.matmul %10, %32, %cst_21 {dimension_numbers = #tpu.dot_dimension_numbers<[1], [0], [0], [1], [0, 0, 1, 1], [], []>} : vector<8x32xbf16>, vector<32x32xbf16>, vector<8x32xf32> -> vector<8x32xf32>
    %c1 = arith.constant 1 : index
    %c0_22 = arith.constant 0 : index
    %c0_23 = arith.constant 0 : index
    %34 = vector.load %arg8[%c1, %c0_22, %c0_23] : memref<3x32x32xbf16, #tpu.memory_space<vmem>>, vector<1x32x32xbf16>
    %35 = vector.shape_cast %34 : vector<1x32x32xbf16> to vector<32x32xbf16>
    %cst_24 = arith.constant dense<0.000000e+00> : vector<8x32xf32>
    %36 = tpu.matmul %20, %35, %cst_24 {dimension_numbers = #tpu.dot_dimension_numbers<[1], [0], [0], [1], [0, 0, 1, 1], [], []>} : vector<8x32xbf16>, vector<32x32xbf16>, vector<8x32xf32> -> vector<8x32xf32>
    %37 = arith.addf %33, %36 : vector<8x32xf32>
    %c2 = arith.constant 2 : index
    %c0_25 = arith.constant 0 : index
    %c0_26 = arith.constant 0 : index
    %38 = vector.load %arg8[%c2, %c0_25, %c0_26] : memref<3x32x32xbf16, #tpu.memory_space<vmem>>, vector<1x32x32xbf16>
    %39 = vector.shape_cast %38 : vector<1x32x32xbf16> to vector<32x32xbf16>
    %cst_27 = arith.constant dense<0.000000e+00> : vector<8x32xf32>
    %40 = tpu.matmul %30, %39, %cst_27 {dimension_numbers = #tpu.dot_dimension_numbers<[1], [0], [0], [1], [0, 0, 1, 1], [], []>} : vector<8x32xbf16>, vector<32x32xbf16>, vector<8x32xf32> -> vector<8x32xf32>
    %41 = arith.addf %37, %40 : vector<8x32xf32>
    %c0_28 = arith.constant 0 : index
    %c0_29 = arith.constant 0 : index
    %42 = vector.load %arg9[%c0_28, %c0_29] : memref<1x32xf32, #tpu.memory_space<vmem>>, vector<1x32xf32>
    %43 = vector.broadcast %42 : vector<1x32xf32> to vector<8x32xf32>
    %44 = arith.addf %41, %43 : vector<8x32xf32>
    %cst_30 = arith.constant 0.000000e+00 : f32
    %45 = vector.broadcast %cst_30 : f32 to vector<8x32xf32>
    %46 = arith.maximumf %44, %45 : vector<8x32xf32>
    %47 = arith.truncf %46 : vector<8x32xf32> to vector<8x32xbf16>
    %c0_31 = arith.constant 0 : index
    %c0_32 = arith.constant 0 : index
    %48 = vector.load %arg10[%c0_31, %c0_32] : memref<32x128xbf16, #tpu.memory_space<vmem>>, vector<32x128xbf16>
    %cst_33 = arith.constant dense<0.000000e+00> : vector<8x128xf32>
    %49 = tpu.matmul %47, %48, %cst_33 {dimension_numbers = #tpu.dot_dimension_numbers<[1], [0], [0], [1], [0, 0, 1, 1], [], []>} : vector<8x32xbf16>, vector<32x128xbf16>, vector<8x128xf32> -> vector<8x128xf32>
    %c0_34 = arith.constant 0 : index
    %c0_35 = arith.constant 0 : index
    %50 = vector.load %arg11[%c0_34, %c0_35] : memref<1x128xf32, #tpu.memory_space<vmem>>, vector<1x128xf32>
    %51 = vector.broadcast %50 : vector<1x128xf32> to vector<8x128xf32>
    %52 = arith.addf %49, %51 : vector<8x128xf32>
    %53 = arith.truncf %52 : vector<8x128xf32> to vector<8x128xbf16>
    %c0_36 = arith.constant 0 : index
    %c0_37 = arith.constant 0 : index
    %54 = vector.load %arg12[%c0_36, %c0_37] : memref<8x128xbf16, #tpu.memory_space<vmem>>, vector<8x128xbf16>
    tpu.vector_store %arg12[%c0_36, %c0_37], %53 {strides = array<i32>} : memref<8x128xbf16, #tpu.memory_space<vmem>>, vector<8x128xbf16>,
    return
  }
  func.func @transform_0(%arg0: i32) -> (i32, i32) {
    %c0_i32 = arith.constant 0 : i32
    %c0_i32_0 = arith.constant 0 : i32
    return %arg0, %c0_i32 : i32, i32
  }
  func.func @transform_1(%arg0: i32) -> (i32, i32) {
    %c0_i32 = arith.constant 0 : i32
    %c0_i32_0 = arith.constant 0 : i32
    return %arg0, %c0_i32 : i32, i32
  }
  func.func @transform_2(%arg0: i32) -> (i32, i32) {
    %c0_i32 = arith.constant 0 : i32
    %c0_i32_0 = arith.constant 0 : i32
    return %arg0, %c0_i32 : i32, i32
  }
  func.func @transform_3(%arg0: i32) -> (i32, i32) {
    %c0_i32 = arith.constant 0 : i32
    %c0_i32_0 = arith.constant 0 : i32
    %c0_i32_1 = arith.constant 0 : i32
    return %c0_i32, %c0_i32_0 : i32, i32
  }
  func.func @transform_4(%arg0: i32) -> (i32, i32) {
    %c0_i32 = arith.constant 0 : i32
    %c0_i32_0 = arith.constant 0 : i32
    %c0_i32_1 = arith.constant 0 : i32
    return %c0_i32, %c0_i32_0 : i32, i32
  }
  func.func @transform_5(%arg0: i32) -> (i32, i32) {
    %c0_i32 = arith.constant 0 : i32
    %c0_i32_0 = arith.constant 0 : i32
    %c0_i32_1 = arith.constant 0 : i32
    return %c0_i32, %c0_i32_0 : i32, i32
  }
  func.func @transform_6(%arg0: i32) -> (i32, i32) {
    %c0_i32 = arith.constant 0 : i32
    %c0_i32_0 = arith.constant 0 : i32
    %c0_i32_1 = arith.constant 0 : i32
    return %c0_i32, %c0_i32_0 : i32, i32
  }
  func.func @transform_7(%arg0: i32) -> (i32, i32, i32) {
    %c0_i32 = arith.constant 0 : i32
    %c0_i32_0 = arith.constant 0 : i32
    %c0_i32_1 = arith.constant 0 : i32
    %c0_i32_2 = arith.constant 0 : i32
    return %c0_i32, %c0_i32_0, %c0_i32_1 : i32, i32, i32
  }
  func.func @transform_8(%arg0: i32) -> (i32, i32) {
    %c0_i32 = arith.constant 0 : i32
    %c0_i32_0 = arith.constant 0 : i32
    %c0_i32_1 = arith.constant 0 : i32
    return %c0_i32, %c0_i32_0 : i32, i32
  }
  func.func @transform_9(%arg0: i32) -> (i32, i32) {
    %c0_i32 = arith.constant 0 : i32
    %c0_i32_0 = arith.constant 0 : i32
    %c0_i32_1 = arith.constant 0 : i32
    return %c0_i32, %c0_i32_0 : i32, i32
  }
  func.func @transform_10(%arg0: i32) -> (i32, i32) {
    %c0_i32 = arith.constant 0 : i32
    %c0_i32_0 = arith.constant 0 : i32
    %c0_i32_1 = arith.constant 0 : i32
    return %c0_i32, %c0_i32_0 : i32, i32
  }
  func.func @transform_11(%arg0: i32) -> (i32, i32) {
    %c0_i32 = arith.constant 0 : i32
    %c0_i32_0 = arith.constant 0 : i32
    return %arg0, %c0_i32 : i32, i32
  }
}

</mosaic_0001>

<llo_original>
// kernel: action_net_triple_stream_forward.1
$region0: #{action_net_triple_stream_forward.1}
  #allocation0 [shape = 'u32[]', space=smem, size = 0x4, offset = 0x4, fixed_abs, tag = 'smem constant byte address 0x4 - core index']
  #allocation1 [shape = 'u32[72,128]{1,0:T(1,128)}', space=vmem, size = 0x9000, scoped, tag = 'internal scratch']
  %s0 = inlined_call_operand.hbm [shape: f32[8,32], index: 0, kind: input, shape index: {}]
  %s1 = inlined_call_operand.hbm [shape: f32[8,32], index: 1, kind: input, shape index: {}]
  %s2 = inlined_call_operand.hbm [shape: f32[8,32], index: 2, kind: input, shape index: {}]
  %s3 = inlined_call_operand.hbm [shape: bf16[32,32], index: 3, kind: input, shape index: {}]
  %s4 = inlined_call_operand.hbm [shape: bf16[32,32], index: 4, kind: input, shape index: {}]
  %s5 = inlined_call_operand.hbm [shape: bf16[32,32], index: 5, kind: input, shape index: {}]
  %s6 = inlined_call_operand.vmem [shape: f32[3,32], index: 6, kind: input, shape index: {}]
  %s7 = inlined_call_operand.hbm [shape: bf16[3,32,32], index: 7, kind: input, shape index: {}]
  %s8 = inlined_call_operand.hbm [shape: f32[1,32], index: 8, kind: input, shape index: {}]
  %s9 = inlined_call_operand.hbm [shape: bf16[32,128], index: 9, kind: input, shape index: {}]
  %s10 = inlined_call_operand.hbm [shape: f32[1,128], index: 10, kind: input, shape index: {}]
  %s11 = inlined_call_operand.hbm [shape: bf16[8,128], index: 11, kind: output, shape index: {}]
  %s12 = sld [smem:[#allocation0]]
  $region94: #{action_net_triple_stream_forward.1} parent=0
    _
  %s14 = ssub.s32 1, %s12
  %s15 = scalar_select 0, %s14, %s12
  $region1: #{action_net_triple_stream_forward.1} parent=0
    #allocation2 [shape = 'u8[4096]{0}', space=vmem, size = 0x1000, scoped, tag = 'input window, operand 0, single buffered']
    #allocation3 [shape = 's32[1]{0}', space=sflag, size = 0x4, scoped, tag = 'scoped memory for action_net_triple_stream_forward.1']
    #allocation4 [shape = 's32[1]{0}', space=sflag, size = 0x4, scoped, tag = 'scoped memory for action_net_triple_stream_forward.1']
    #allocation5 [shape = 'u8[4096]{0}', space=vmem, size = 0x1000, scoped, tag = 'input window, operand 1, single buffered']
    #allocation6 [shape = 's32[1]{0}', space=sflag, size = 0x4, scoped, tag = 'scoped memory for action_net_triple_stream_forward.1']
    #allocation7 [shape = 'u8[4096]{0}', space=vmem, size = 0x1000, scoped, tag = 'input window, operand 2, single buffered']
    #allocation8 [shape = 'u8[8192]{0}', space=vmem, size = 0x2000, scoped, tag = 'input window, operand 3, single buffered']
    #allocation9 [shape = 's32[1]{0}', space=sflag, size = 0x4, scoped, tag = 'scoped memory for action_net_triple_stream_forward.1']
    #allocation10 [shape = 'u8[8192]{0}', space=vmem, size = 0x2000, scoped, tag = 'input window, operand 4, single buffered']
    #allocation11 [shape = 'u8[8192]{0}', space=vmem, size = 0x2000, scoped, tag = 'input window, operand 5, single buffered']
    #allocation12 [shape = 's32[1]{0}', space=sflag, size = 0x4, scoped, tag = 'scoped memory for action_net_triple_stream_forward.1']
    #allocation13 [shape = 'u8[24576]{0}', space=vmem, size = 0x6000, scoped, tag = 'input window, operand 7, single buffered']
    #allocation14 [shape = 'u8[512]{0}', space=vmem, size = 0x400, scoped, tag = 'input window, operand 8, single buffered']
    #allocation15 [shape = 's32[1]{0}', space=sflag, size = 0x4, scoped, tag = 'scoped memory for action_net_triple_stream_forward.1']
    #allocation16 [shape = 'u8[8192]{0}', space=vmem, size = 0x2000, scoped, tag = 'input window, operand 9, single buffered']
    #allocation17 [shape = 'u8[512]{0}', space=vmem, size = 0x400, scoped, tag = 'input window, operand 10, single buffered']
    #allocation18 [shape = 's32[1]{0}', space=sflag, size = 0x4, scoped, tag = 'scoped memory for action_net_triple_stream_forward.1']
    #allocation19 [shape = 'u8[2048]{0}', space=vmem, size = 0x800, scoped, tag = 'output window, operand 0, single buffered']
    %16 = vsyncpa [#allocation3], 0
    %17 = vsyncpa [#allocation6], 0
    %18 = vsyncpa [#allocation9], 0
    %19 = vsyncpa [#allocation12], 0
    %20 = vsyncpa [#allocation15], 0
    %21 = vsyncpa [#allocation18], 0
    %22 = vsyncpa [#allocation4], 0
    // Predicated region
    $region2: #{action_net_triple_stream_forward.1} parent=1 // pred_check
      _
    $region3: #{action_net_triple_stream_forward.1} parent=1 // pred_check_branch
      %24 = sbr.rel (0) target = $region5
    $region4: #{action_net_triple_stream_forward.1} parent=1 // pred_region
      %26 = vsyncadd [#allocation3], 0
      %s28 = sshll.u32 %s0, 4
      %s29 = int_to_ptr.hbm [resolvable:$true] %s28
      %s30 = sshll.u32 [#allocation2], 4
      %s31 = int_to_ptr.vmem [resolvable:$true] %s30
      %33 = dma.hbm_to_vmem [thread:$0]  %s29, 128, %s31, [#allocation3]
    $region5: #{action_net_triple_stream_forward.1} parent=1 // pred_fallthru
      _
    // Predicated region
    $region6: #{action_net_triple_stream_forward.1} parent=1 // pred_check
      _
    $region7: #{action_net_triple_stream_forward.1} parent=1 // pred_check_branch
      %35 = sbr.rel (0) target = $region9
    $region8: #{action_net_triple_stream_forward.1} parent=1 // pred_region
      %37 = vsyncadd [#allocation6], 0
      %s39 = sshll.u32 %s1, 4
      %s40 = int_to_ptr.hbm [resolvable:$true] %s39
      %s41 = sshll.u32 [#allocation5], 4
      %s42 = int_to_ptr.vmem [resolvable:$true] %s41
      %44 = dma.hbm_to_vmem [thread:$0]  %s40, 128, %s42, [#allocation6]
    $region9: #{action_net_triple_stream_forward.1} parent=1 // pred_fallthru
      _
    // Predicated region
    $region10: #{action_net_triple_stream_forward.1} parent=1 // pred_check
      _
    $region11: #{action_net_triple_stream_forward.1} parent=1 // pred_check_branch
      %46 = sbr.rel (0) target = $region13
    $region12: #{action_net_triple_stream_forward.1} parent=1 // pred_region
      %48 = vsyncadd [#allocation6], 0
      %s50 = sshll.u32 %s2, 4
      %s51 = int_to_ptr.hbm [resolvable:$true] %s50
      %s52 = sshll.u32 [#allocation7], 4
      %s53 = int_to_ptr.vmem [resolvable:$true] %s52
      %55 = dma.hbm_to_vmem [thread:$0]  %s51, 128, %s53, [#allocation6]
    $region13: #{action_net_triple_stream_forward.1} parent=1 // pred_fallthru
      _
    // Predicated region
    $region14: #{action_net_triple_stream_forward.1} parent=1 // pred_check
      _
    $region15: #{action_net_triple_stream_forward.1} parent=1 // pred_check_branch
      %57 = sbr.rel (0) target = $region17
    $region16: #{action_net_triple_stream_forward.1} parent=1 // pred_region
      %59 = vsyncadd [#allocation9], 0
      %s60 = sshll.u32 %s3, 4
      %s61 = int_to_ptr.hbm [resolvable:$true] %s60
      %s62 = sshll.u32 [#allocation8], 4
      %s63 = int_to_ptr.vmem [resolvable:$true] %s62
      %68 = dma.hbm_to_vmem [thread:$0]  %s61, 256, %s63, [#allocation9], 64, 64, 4
    $region17: #{action_net_triple_stream_forward.1} parent=1 // pred_fallthru
      _
    // Predicated region
    $region18: #{action_net_triple_stream_forward.1} parent=1 // pred_check
      _
    $region19: #{action_net_triple_stream_forward.1} parent=1 // pred_check_branch
      %70 = sbr.rel (0) target = $region21
    $region20: #{action_net_triple_stream_forward.1} parent=1 // pred_region
      %72 = vsyncadd [#allocation9], 0
      %s73 = sshll.u32 %s4, 4
      %s74 = int_to_ptr.hbm [resolvable:$true] %s73
      %s75 = sshll.u32 [#allocation10], 4
      %s76 = int_to_ptr.vmem [resolvable:$true] %s75
      %81 = dma.hbm_to_vmem [thread:$0]  %s74, 256, %s76, [#allocation9], 64, 64, 4
    $region21: #{action_net_triple_stream_forward.1} parent=1 // pred_fallthru
      _
    // Predicated region
    $region22: #{action_net_triple_stream_forward.1} parent=1 // pred_check
      _
    $region23: #{action_net_triple_stream_forward.1} parent=1 // pred_check_branch
      %83 = sbr.rel (0) target = $region25
    $region24: #{action_net_triple_stream_forward.1} parent=1 // pred_region
      %85 = vsyncadd [#allocation12], 0
      %s86 = sshll.u32 %s5, 4
      %s87 = int_to_ptr.hbm [resolvable:$true] %s86
      %s88 = sshll.u32 [#allocation11], 4
      %s89 = int_to_ptr.vmem [resolvable:$true] %s88
      %94 = dma.hbm_to_vmem [thread:$0]  %s87, 256, %s89, [#allocation12], 64, 64, 4
    $region25: #{action_net_triple_stream_forward.1} parent=1 // pred_fallthru
      _
    // Predicated region
    $region26: #{action_net_triple_stream_forward.1} parent=1 // pred_check
      _
    $region27: #{action_net_triple_stream_forward.1} parent=1 // pred_check_branch
      %96 = sbr.rel (0) target = $region29
    $region28: #{action_net_triple_stream_forward.1} parent=1 // pred_region
      _
    $region29: #{action_net_triple_stream_forward.1} parent=1 // pred_fallthru
      _
    // Predicated region
    $region30: #{action_net_triple_stream_forward.1} parent=1 // pred_check
      _
    $region31: #{action_net_triple_stream_forward.1} parent=1 // pred_check_branch
      %98 = sbr.rel (0) target = $region33
    $region32: #{action_net_triple_stream_forward.1} parent=1 // pred_region
      %100 = vsyncadd [#allocation12], 0
      %s101 = sshll.u32 %s7, 4
      %s102 = int_to_ptr.hbm [resolvable:$true] %s101
      %s103 = sshll.u32 [#allocation13], 4
      %s104 = int_to_ptr.vmem [resolvable:$true] %s103
      %109 = dma.hbm_to_vmem [thread:$0]  %s102, 768, %s104, [#allocation12], 64, 64, 4
    $region33: #{action_net_triple_stream_forward.1} parent=1 // pred_fallthru
      _
    // Predicated region
    $region34: #{action_net_triple_stream_forward.1} parent=1 // pred_check
      _
    $region35: #{action_net_triple_stream_forward.1} parent=1 // pred_check_branch
      %111 = sbr.rel (0) target = $region37
    $region36: #{action_net_triple_stream_forward.1} parent=1 // pred_region
      %113 = vsyncadd [#allocation15], 0
      %s115 = sshll.u32 %s8, 4
      %s116 = int_to_ptr.hbm [resolvable:$true] %s115
      %s117 = sshll.u32 [#allocation14], 4
      %s118 = int_to_ptr.vmem [resolvable:$true] %s117
      %120 = dma.hbm_to_vmem [thread:$0]  %s116, 16, %s118, [#allocation15]
    $region37: #{action_net_triple_stream_forward.1} parent=1 // pred_fallthru
      _
    // Predicated region
    $region38: #{action_net_triple_stream_forward.1} parent=1 // pred_check
      _
    $region39: #{action_net_triple_stream_forward.1} parent=1 // pred_check_branch
      %122 = sbr.rel (0) target = $region41
    $region40: #{action_net_triple_stream_forward.1} parent=1 // pred_region
      %124 = vsyncadd [#allocation15], 0
      %s125 = sshll.u32 %s9, 4
      %s126 = int_to_ptr.hbm [resolvable:$true] %s125
      %s127 = sshll.u32 [#allocation16], 4
      %s128 = int_to_ptr.vmem [resolvable:$true] %s127
      %133 = dma.hbm_to_vmem [thread:$0]  %s126, 256, %s128, [#allocation15], 64, 64, 4
    $region41: #{action_net_triple_stream_forward.1} parent=1 // pred_fallthru
      _
    // Predicated region
    $region42: #{action_net_triple_stream_forward.1} parent=1 // pred_check
      _
    $region43: #{action_net_triple_stream_forward.1} parent=1 // pred_check_branch
      %135 = sbr.rel (0) target = $region45
    $region44: #{action_net_triple_stream_forward.1} parent=1 // pred_region
      %137 = vsyncadd [#allocation18], 0
      %s139 = sshll.u32 %s10, 4
      %s140 = int_to_ptr.hbm [resolvable:$true] %s139
      %s141 = sshll.u32 [#allocation17], 4
      %s142 = int_to_ptr.vmem [resolvable:$true] %s141
      %144 = dma.hbm_to_vmem [thread:$0]  %s140, 16, %s142, [#allocation18]
    $region45: #{action_net_triple_stream_forward.1} parent=1 // pred_fallthru
      _
    // Predicated region
    $region46: #{action_net_triple_stream_forward.1} parent=1 // pred_check
      _
    $region47: #{action_net_triple_stream_forward.1} parent=1 // pred_check_branch
      %146 = sbr.rel (0) target = $region49
    $region48: #{action_net_triple_stream_forward.1} parent=1 // pred_region
      %148 = dma.done [#allocation3], 128
    $region49: #{action_net_triple_stream_forward.1} parent=1 // pred_fallthru
      _
    // Predicated region
    $region50: #{action_net_triple_stream_forward.1} parent=1 // pred_check
      _
    $region51: #{action_net_triple_stream_forward.1} parent=1 // pred_check_branch
      %150 = sbr.rel (0) target = $region53
    $region52: #{action_net_triple_stream_forward.1} parent=1 // pred_region
      %152 = dma.done [#allocation6], 128
    $region53: #{action_net_triple_stream_forward.1} parent=1 // pred_fallthru
      _
    // Predicated region
    $region54: #{action_net_triple_stream_forward.1} parent=1 // pred_check
      _
    $region55: #{action_net_triple_stream_forward.1} parent=1 // pred_check_branch
      %154 = sbr.rel (0) target = $region57
    $region56: #{action_net_triple_stream_forward.1} parent=1 // pred_region
      %156 = dma.done [#allocation6], 128
    $region57: #{action_net_triple_stream_forward.1} parent=1 // pred_fallthru
      _
    // Predicated region
    $region58: #{action_net_triple_stream_forward.1} parent=1 // pred_check
      _
    $region59: #{action_net_triple_stream_forward.1} parent=1 // pred_check_branch
      %158 = sbr.rel (0) target = $region61
    $region60: #{action_net_triple_stream_forward.1} parent=1 // pred_region
      %160 = dma.done [#allocation9], 256
    $region61: #{action_net_triple_stream_forward.1} parent=1 // pred_fallthru
      _
    // Predicated region
    $region62: #{action_net_triple_stream_forward.1} parent=1 // pred_check
      _
    $region63: #{action_net_triple_stream_forward.1} parent=1 // pred_check_branch
      %162 = sbr.rel (0) target = $region65
    $region64: #{action_net_triple_stream_forward.1} parent=1 // pred_region
      %164 = dma.done [#allocation9], 256
    $region65: #{action_net_triple_stream_forward.1} parent=1 // pred_fallthru
      _
    // Predicated region
    $region66: #{action_net_triple_stream_forward.1} parent=1 // pred_check
      _
    $region67: #{action_net_triple_stream_forward.1} parent=1 // pred_check_branch
      %166 = sbr.rel (0) target = $region69
    $region68: #{action_net_triple_stream_forward.1} parent=1 // pred_region
      %168 = dma.done [#allocation12], 256
    $region69: #{action_net_triple_stream_forward.1} parent=1 // pred_fallthru
      _
    // Predicated region
    $region70: #{action_net_triple_stream_forward.1} parent=1 // pred_check
      _
    $region71: #{action_net_triple_stream_forward.1} parent=1 // pred_check_branch
      %170 = sbr.rel (0) target = $region73
    $region72: #{action_net_triple_stream_forward.1} parent=1 // pred_region
      %172 = dma.done [#allocation12], 768
    $region73: #{action_net_triple_stream_forward.1} parent=1 // pred_fallthru
      _
    // Predicated region
    $region74: #{action_net_triple_stream_forward.1} parent=1 // pred_check
      _
    $region75: #{action_net_triple_stream_forward.1} parent=1 // pred_check_branch
      %174 = sbr.rel (0) target = $region77
    $region76: #{action_net_triple_stream_forward.1} parent=1 // pred_region
      %176 = dma.done [#allocation15], 16
    $region77: #{action_net_triple_stream_forward.1} parent=1 // pred_fallthru
      _
    // Predicated region
    $region78: #{action_net_triple_stream_forward.1} parent=1 // pred_check
      _
    $region79: #{action_net_triple_stream_forward.1} parent=1 // pred_check_branch
      %178 = sbr.rel (0) target = $region81
    $region80: #{action_net_triple_stream_forward.1} parent=1 // pred_region
      %180 = dma.done [#allocation15], 256
    $region81: #{action_net_triple_stream_forward.1} parent=1 // pred_fallthru
      _
    // Predicated region
    $region82: #{action_net_triple_stream_forward.1} parent=1 // pred_check
      _
    $region83: #{action_net_triple_stream_forward.1} parent=1 // pred_check_branch
      %182 = sbr.rel (0) target = $region85
    $region84: #{action_net_triple_stream_forward.1} parent=1 // pred_region
      %184 = dma.done [#allocation18], 16
    $region85: #{action_net_triple_stream_forward.1} parent=1 // pred_fallthru
      _
    %v186 = vld [vmem:[%s6] sm:$0x7]
    %v187 = vld [vmem:[#allocation2] sm:$0xff]
    %v188 = vpack.c.bf16 %v187, %v187
    %v189 = vld [vmem:[#allocation8] sm:$0xf]
    %v190 = vld [vmem:[#allocation8 + $0x4] sm:$0xf]
    %v191 = vld [vmem:[#allocation8 + $0x8] sm:$0xf]
    %v192 = vld [vmem:[#allocation8 + $0xc] sm:$0xf]
    %v193 = vperm.slane %v186, 0
    %v198 = vunpack.c.l.b16 %v189
    %v199 = vunpack.c.l.b16 %v190
    %v200 = vunpack.c.l.b16 %v191
    %v201 = vunpack.c.l.b16 %v192
    %v202 = vpack.c.b16 %v199, %v198
    %v203 = vpack.c.b16 %v201, %v200
    %vm206 = vcmask 261120
    %v208 = vsel %vm206, %v188, 0
    %210 = vmatpush.bf16.msra.mxu0 0
    %211 = vmatpush.bf16.msra.mxu0 0
    %212 = vmatpush.bf16.msra.mxu0 0
    %213 = vmatpush.bf16.msra.mxu0 0
    %214 = vmatpush.bf16.msra.mxu0 0
    %215 = vmatpush.bf16.msra.mxu0 0
    %216 = vmatpush.bf16.msra.mxu0 %v203
    %217 = vmatpush.bf16.msra.mxu0 %v202
    %218 = vmatmul.bf16.gmra.mxu0 %v208
    %v219 = vpop.f32.mrf.mxu0
    %v220 = vadd.f32 %v193, %v219
    %v221 = vpop.f32.mrf.mxu0
    %222 = vdwg.mxu0
    %v223 = vmax.f32 %v220, 0.0
    %v224 = vpack.c.bf16 %v223, %v223
    %v225 = vld [vmem:[#allocation5] sm:$0xff]
    %v226 = vpack.c.bf16 %v225, %v225
    %v227 = vld [vmem:[#allocation10] sm:$0xf]
    %v228 = vld [vmem:[#allocation10 + $0x4] sm:$0xf]
    %v229 = vld [vmem:[#allocation10 + $0x8] sm:$0xf]
    %v230 = vld [vmem:[#allocation10 + $0xc] sm:$0xf]
    %v231 = vperm.slane %v186, 1
    %v236 = vunpack.c.l.b16 %v227
    %v237 = vunpack.c.l.b16 %v228
    %v238 = vunpack.c.l.b16 %v229
    %v239 = vunpack.c.l.b16 %v230
    %v240 = vpack.c.b16 %v237, %v236
    %v241 = vpack.c.b16 %v239, %v238
    %v245 = vsel %vm206, %v226, 0
    %247 = vmatpush.bf16.msra.mxu0 0
    %248 = vmatpush.bf16.msra.mxu0 0
    %249 = vmatpush.bf16.msra.mxu0 0
    %250 = vmatpush.bf16.msra.mxu0 0
    %251 = vmatpush.bf16.msra.mxu0 0
    %252 = vmatpush.bf16.msra.mxu0 0
    %253 = vmatpush.bf16.msra.mxu0 %v241
    %254 = vmatpush.bf16.msra.mxu0 %v240
    %255 = vmatmul.bf16.gmra.mxu0 %v245
    %v256 = vpop.f32.mrf.mxu0
    %v257 = vadd.f32 %v231, %v256
    %v258 = vpop.f32.mrf.mxu0
    %259 = vdwg.mxu0
    %v260 = vmax.f32 %v257, 0.0
    %v261 = vpack.c.bf16 %v260, %v260
    %v262 = vld [vmem:[#allocation7] sm:$0xff]
    %v263 = vpack.c.bf16 %v262, %v262
    %v264 = vld [vmem:[#allocation11] sm:$0xf]
    %v265 = vld [vmem:[#allocation11 + $0x4] sm:$0xf]
    %v266 = vld [vmem:[#allocation11 + $0x8] sm:$0xf]
    %v267 = vld [vmem:[#allocation11 + $0xc] sm:$0xf]
    %v268 = vperm.slane %v186, 2
    %v273 = vunpack.c.l.b16 %v264
    %v274 = vunpack.c.l.b16 %v265
    %v275 = vunpack.c.l.b16 %v266
    %v276 = vunpack.c.l.b16 %v267
    %v277 = vpack.c.b16 %v274, %v273
    %v278 = vpack.c.b16 %v276, %v275
    %v282 = vsel %vm206, %v263, 0
    %284 = vmatpush.bf16.msra.mxu0 0
    %285 = vmatpush.bf16.msra.mxu0 0
    %286 = vmatpush.bf16.msra.mxu0 0
    %287 = vmatpush.bf16.msra.mxu0 0
    %288 = vmatpush.bf16.msra.mxu0 0
    %289 = vmatpush.bf16.msra.mxu0 0
    %290 = vmatpush.bf16.msra.mxu0 %v278
    %291 = vmatpush.bf16.msra.mxu0 %v277
    %292 = vmatmul.bf16.gmra.mxu0 %v282
    %v293 = vpop.f32.mrf.mxu0
    %v294 = vadd.f32 %v268, %v293
    %v295 = vpop.f32.mrf.mxu0
    %296 = vdwg.mxu0
    %v297 = vmax.f32 %v294, 0.0
    %v298 = vpack.c.bf16 %v297, %v297
    %v299 = vld [vmem:[#allocation13] sm:$0xf]
    %v300 = vld [vmem:[#allocation13 + $0x4] sm:$0xf]
    %v301 = vld [vmem:[#allocation13 + $0x8] sm:$0xf]
    %v302 = vld [vmem:[#allocation13 + $0xc] sm:$0xf]
    %s303 = scalar_lea.vmem [#allocation13], 16
    %v304 = vld [vmem:[%s303] sm:$0xf]
    %v305 = vld [vmem:[%s303 + $0x4] sm:$0xf]
    %v306 = vld [vmem:[%s303 + $0x8] sm:$0xf]
    %v307 = vld [vmem:[%s303 + $0xc] sm:$0xf]
    %v312 = vunpack.c.l.b16 %v304
    %v313 = vunpack.c.l.b16 %v305
    %v314 = vunpack.c.l.b16 %v306
    %v315 = vunpack.c.l.b16 %v307
    %v316 = vpack.c.b16 %v313, %v312
    %v317 = vpack.c.b16 %v315, %v314
    %v321 = vsel %vm206, %v261, 0
    %323 = vmatpush.bf16.msra.mxu0 0
    %324 = vmatpush.bf16.msra.mxu0 0
    %325 = vmatpush.bf16.msra.mxu0 0
    %326 = vmatpush.bf16.msra.mxu0 0
    %327 = vmatpush.bf16.msra.mxu0 0
    %328 = vmatpush.bf16.msra.mxu0 0
    %329 = vmatpush.bf16.msra.mxu0 %v317
    %330 = vmatpush.bf16.msra.mxu0 %v316
    %331 = vmatmul.bf16.gmra.mxu0 %v321
    %v332 = vpop.f32.mrf.mxu0
    %v333 = vadd.f32 0.0, %v332
    %v334 = vpop.f32.mrf.mxu0
    %335 = vdwg.mxu0
    %v340 = vunpack.c.l.b16 %v299
    %v341 = vunpack.c.l.b16 %v300
    %v342 = vunpack.c.l.b16 %v301
    %v343 = vunpack.c.l.b16 %v302
    %v344 = vpack.c.b16 %v341, %v340
    %v345 = vpack.c.b16 %v343, %v342
    %v349 = vsel %vm206, %v224, 0
    %351 = vmatpush.bf16.msra.mxu0 0
    %352 = vmatpush.bf16.msra.mxu0 0
    %353 = vmatpush.bf16.msra.mxu0 0
    %354 = vmatpush.bf16.msra.mxu0 0
    %355 = vmatpush.bf16.msra.mxu0 0
    %356 = vmatpush.bf16.msra.mxu0 0
    %357 = vmatpush.bf16.msra.mxu0 %v345
    %358 = vmatpush.bf16.msra.mxu0 %v344
    %359 = vmatmul.bf16.gmra.mxu0 %v349
    %v360 = vpop.f32.mrf.mxu0
    %v361 = vadd.f32 %v333, %v360
    %v362 = vpop.f32.mrf.mxu0
    %363 = vdwg.mxu0
    %s364 = scalar_lea.vmem [#allocation13], 32
    %v365 = vld [vmem:[%s364] sm:$0xf]
    %v366 = vld [vmem:[%s364 + $0x4] sm:$0xf]
    %v367 = vld [vmem:[%s364 + $0x8] sm:$0xf]
    %v368 = vld [vmem:[%s364 + $0xc] sm:$0xf]
    %v373 = vunpack.c.l.b16 %v365
    %v374 = vunpack.c.l.b16 %v366
    %v375 = vunpack.c.l.b16 %v367
    %v376 = vunpack.c.l.b16 %v368
    %v377 = vpack.c.b16 %v374, %v373
    %v378 = vpack.c.b16 %v376, %v375
    %v382 = vsel %vm206, %v298, 0
    %384 = vmatpush.bf16.msra.mxu0 0
    %385 = vmatpush.bf16.msra.mxu0 0
    %386 = vmatpush.bf16.msra.mxu0 0
    %387 = vmatpush.bf16.msra.mxu0 0
    %388 = vmatpush.bf16.msra.mxu0 0
    %389 = vmatpush.bf16.msra.mxu0 0
    %390 = vmatpush.bf16.msra.mxu0 %v378
    %391 = vmatpush.bf16.msra.mxu0 %v377
    %392 = vmatmul.bf16.gmra.mxu0 %v382
    %v393 = vpop.f32.mrf.mxu0
    %v394 = vadd.f32 0.0, %v393
    %v395 = vpop.f32.mrf.mxu0
    %396 = vdwg.mxu0
    %v397 = vadd.f32 %v361, %v394
    %v398 = vld [vmem:[#allocation14] sm:$0x1]
    %v400 = vperm.slane %v398, 0
    %v402 = vadd.f32 %v397, %v400
    %v403 = vmax.f32 %v402, 0.0
    %v404 = vpack.c.bf16 %v403, %v403
    %v405 = vld [vmem:[#allocation16] sm:$0xf]
    %v406 = vld [vmem:[#allocation16 + $0x4] sm:$0xf]
    %v407 = vld [vmem:[#allocation16 + $0x8] sm:$0xf]
    %v408 = vld [vmem:[#allocation16 + $0xc] sm:$0xf]
    %v409 = vld [vmem:[#allocation17] sm:$0x1]
    %v411 = vperm.slane %v409, 0
    %v417 = vunpack.c.l.b16 %v405
    %v418 = vunpack.c.l.b16 %v406
    %v419 = vunpack.c.l.b16 %v407
    %v420 = vunpack.c.l.b16 %v408
    %v421 = vpack.c.b16 %v418, %v417
    %v422 = vpack.c.b16 %v420, %v419
    %v426 = vsel %vm206, %v404, 0
    %428 = vmatpush.bf16.msra.mxu0 0
    %429 = vmatpush.bf16.msra.mxu0 0
    %430 = vmatpush.bf16.msra.mxu0 0
    %431 = vmatpush.bf16.msra.mxu0 0
    %432 = vmatpush.bf16.msra.mxu0 0
    %433 = vmatpush.bf16.msra.mxu0 0
    %434 = vmatpush.bf16.msra.mxu0 %v422
    %435 = vmatpush.bf16.msra.mxu0 %v421
    %436 = vmatmul.bf16.gmra.mxu0 %v426
    %v437 = vpop.f32.mrf.mxu0
    %v438 = vadd.f32 %v411, %v437
    %v439 = vpop.f32.mrf.mxu0
    %440 = vdwg.mxu0
    %v441 = vpack.c.bf16 %v438, %v438
    %442 = vst [vmem:[#allocation19] sm:$0xf] %v441
    // Predicated region
    $region86: #{action_net_triple_stream_forward.1} parent=1 // pred_check
      _
    $region87: #{action_net_triple_stream_forward.1} parent=1 // pred_check_branch
      %444 = sbr.rel (0) target = $region89
    $region88: #{action_net_triple_stream_forward.1} parent=1 // pred_region
      %446 = vsyncadd [#allocation4], 0
      %s448 = sshll.u32 [#allocation19], 4
      %s449 = int_to_ptr.vmem [resolvable:$true] %s448
      %s450 = sshll.u32 %s11, 4
      %s451 = int_to_ptr.hbm [resolvable:$true] %s450
      %453 = dma.vmem_to_hbm [thread:$0]  %s449, 64, %s451, [#allocation4]
    $region89: #{action_net_triple_stream_forward.1} parent=1 // pred_fallthru
      _
    // Predicated region
    $region90: #{action_net_triple_stream_forward.1} parent=1 // pred_check
      _
    $region91: #{action_net_triple_stream_forward.1} parent=1 // pred_check_branch
      %455 = sbr.rel (0) target = $region93
    $region92: #{action_net_triple_stream_forward.1} parent=1 // pred_region
      %457 = dma.done [#allocation4], 64
    $region93: #{action_net_triple_stream_forward.1} parent=1 // pred_fallthru
      _
    %458 = vsyncpa [#allocation3], 1
    %459 = vsyncpa [#allocation6], 1
    %460 = vsyncpa [#allocation9], 1
    %461 = vsyncpa [#allocation12], 1
    %462 = vsyncpa [#allocation15], 1
    %463 = vsyncpa [#allocation18], 1
    %464 = vsyncpa [#allocation4], 1

</llo_original>
